<compile_context>
chip_gen: v5e
topology: v5e:2x2
jax: 0.10.0
libtpu: 0.0.40
codegen_flags: <defaults>
</compile_context>

<pallas_src>
from functools import partial

import numpy as np
import jax
import jax.numpy as jnp
from jax import lax
from jax.experimental import pallas as pl
from jax.experimental.pallas import tpu as pltpu


# ---------------------------------------------------------------------------
# Pallas kernel: per-(batch, channel) partial sums for both losses
# Output layout (n_out = 3 + 2*scale_num):
#   [0] sum(dlog*m)  [1] sum(dlog^2*m)  [2] sum(m)
#   [3+2s] gradient sum at scale s      [4+2s] gradient pair-count at scale s
# ---------------------------------------------------------------------------
def mixed_loss_kernel(pred_ref, targ_ref, mask_ref, out_ref, *,
                      num_scales, step, si_eps):
    H, W = pred_ref.shape[2], pred_ref.shape[3]

    p = pred_ref[0, 0].astype(jnp.float32)     # (H, W)
    t = targ_ref[0, 0].astype(jnp.float32)     # (H, W)
    m = mask_ref[0, 0].astype(jnp.float32)     # int8 {0,1} -> f32

    c = pl.program_id(1)

    # --- shared transcendentals (2 logs/elem for BOTH losses) ---------------
    # SiLog : diff_log = log(t+eps) - log(p+eps)                (valid pixels)
    # GradLi: d = log(p) - log(t + (1-m)*1000); |d_i-d_j| == |dlog_i-dlog_j|
    p_log = jnp.log(p + si_eps)
    t_log = jnp.log(t + si_eps + (1.0 - m) * 1000.0)
    dlog = t_log - p_log

    # --- SiLog partial sums (masking fused into one multiply) ---------------
    dlm = dlog * m
    out_ref[0, 0, 0] = jnp.sum(dlm)
    out_ref[0, 0, 1] = jnp.sum(dlm * dlog)
    out_ref[0, 0, 2] = jnp.sum(m)

    # --- horizontal gradient: lane-reduce once, reuse for every scale -------
    if step < W:
        mh = m[:, :-step] * m[:, step:]
        dh = jnp.abs(dlog[:, :-step] - dlog[:, step:]) * mh
        h_grad_rows = jnp.sum(dh, axis=1, keepdims=True)     # (H, 1)
        h_cnt_rows = jnp.sum(mh, axis=1, keepdims=True)      # (H, 1)
    else:
        h_grad_rows = jnp.zeros((H, 1), jnp.float32)
        h_cnt_rows = jnp.zeros((H, 1), jnp.float32)

    row = lax.broadcasted_iota(jnp.int32, (H, 1), 0)

    def scale_partials(dec, i_sum, i_cnt):
        # rows kept by the [::dec] row decimation
        if dec > 1:
            rmask = (jnp.bitwise_and(row, dec - 1) == 0).astype(jnp.float32)
            g_sum = jnp.sum(rmask * h_grad_rows)
            g_cnt = jnp.sum(rmask * h_cnt_rows)
        else:
            rmask = None
            g_sum = jnp.sum(h_grad_rows)
            g_cnt = jnp.sum(h_cnt_rows)
        # vertical gradient: decimated rows (i, i+step) == original rows
        # (r, r + step*dec) with r % dec == 0 and r + step*dec < H.
        shift = step * dec
        if shift < H:                                        # static at trace time
            mv = m[:-shift, :] * m[shift:, :]
            dv = jnp.abs(dlog[:-shift, :] - dlog[shift:, :]) * mv
            v_g = jnp.sum(dv, axis=1, keepdims=True)         # lane-reduce first
            v_c = jnp.sum(mv, axis=1, keepdims=True)
            if rmask is not None:
                v_g = rmask[:H - shift] * v_g                # mask the columns only
                v_c = rmask[:H - shift] * v_c
            g_sum = g_sum + jnp.sum(v_g)
            g_cnt = g_cnt + jnp.sum(v_c)
        out_ref[0, 0, i_sum] = g_sum
        out_ref[0, 0, i_cnt] = g_cnt

    for s in range(num_scales):
        dec = 1 << s
        i_sum, i_cnt = 3 + 2 * s, 4 + 2 * s
        # default contribution when this channel is dropped by [::dec]
        out_ref[0, 0, i_sum] = jnp.float32(0.0)
        out_ref[0, 0, i_cnt] = jnp.float32(0.0)
        if dec == 1:
            scale_partials(dec, i_sum, i_cnt)
        else:
            # channel kept by the [::dec] channel decimation -> otherwise skip
            # the whole vertical gradient / reductions for this scale.
            pl.when(jnp.bitwise_and(c, dec - 1) == 0)(
                lambda dec=dec, i_s=i_sum, i_c=i_cnt: scale_partials(dec, i_s, i_c))


# ---------------------------------------------------------------------------
# Wrapper = MixedLoss.forward  ->  (total_loss, si_loss, grad_loss)
# ---------------------------------------------------------------------------
def mixed_loss(pred, target, valid_mask, *,
               siloss_lambd=0.5, grad_loss_weight=0.25, do_sqrt=False,
               scale_num=4, log_normalize=False, grad_step=2,
               si_eps=1e-8, grad_eps=1e-6, grad_li_loss_weight=1.0):
    if log_normalize:
        pred = jnp.log1p(pred) / jnp.log1p(jnp.max(pred))
        target = jnp.log1p(target) / jnp.log1p(jnp.max(target))

    p, t, mk = pred, target, valid_mask
    if p.ndim == 3:                      # GradientLoss_Li's unsqueeze(1)
        p, t, mk = p[:, None], t[:, None], mk[:, None]
    B, C, H, W = p.shape

    # Mask travels as 1 B/elem; pred/target stay in their native dtype and are
    # cast to f32 inside the kernel (no wrapper-materialized f32 copies).
    m8 = mk.astype(jnp.int8)

    n_out = 3 + 2 * scale_num
    bytes_per_step = H * W * (p.dtype.itemsize + t.dtype.itemsize + 1)
    vmem_limit = int(min(max(2 * bytes_per_step + (2 << 20), 16 << 20), 40 << 20))

    cost = pl.CostEstimate(
        flops=int(30 * B * C * H * W),
        transcendentals=int(2 * B * C * H * W),
        bytes_accessed=int(B * C * bytes_per_step + B * C * n_out * 4))

    partials = pl.pallas_call(
        partial(mixed_loss_kernel, num_scales=scale_num, step=grad_step,
                si_eps=si_eps),
        out_shape=jax.ShapeDtypeStruct((B * C, 1, n_out), jnp.float32),
        grid=(B, C),
        in_specs=[pl.BlockSpec((1, 1, H, W), lambda b, c: (b, c, 0, 0))] * 3,
        out_specs=pl.BlockSpec((1, 1, n_out), lambda b, c: (b * C + c, 0, 0),
                               memory_space=pltpu.MemorySpace.SMEM),
        compiler_params=pltpu.CompilerParams(
            dimension_semantics=("parallel", "parallel"),
            vmem_limit_bytes=vmem_limit),
        cost_estimate=cost,
    )(p, t, m8)

    sums = jnp.sum(partials.reshape(B * C, n_out), axis=0)

    # ---- SiLogLoss ----
    si_sum, si_sumsq, si_cnt = sums[0], sums[1], sums[2]
    d_square_mean = si_sumsq / si_cnt
    d_mean = si_sum / si_cnt
    si_loss = d_square_mean - siloss_lambd * (d_mean * d_mean)
    if do_sqrt:
        si_loss = jnp.sqrt(si_loss)

    # ---- GradientLoss_Li ----
    grad_total = jnp.float32(0.0)
    for s in range(scale_num):
        grad_total = grad_total + sums[3 + 2 * s] / (sums[4 + 2 * s] + grad_eps)
    grad_loss = (grad_total / scale_num) * grad_li_loss_weight

    total = si_loss + grad_loss_weight * grad_loss
    return total, si_loss, grad_loss


# ---------------------------------------------------------------------------
# Pure-JAX reference (independent implementation, validation only)
# ---------------------------------------------------------------------------
def ref_mixed_loss(pred, target, valid_mask, siloss_lambd=0.5,
                   grad_loss_weight=0.25, scale_num=4, grad_step=2):
    pred = pred.astype(jnp.float32)
    target = target.astype(jnp.float32)

    # SiLogLoss
    eps = 1e-8
    mf = valid_mask.astype(jnp.float32)
    n = jnp.sum(mf)
    dl = jnp.log(target + eps) - jnp.log(pred + eps)
    dl = jnp.where(valid_mask, dl, 0.0)
    si = jnp.sum(dl * dl) / n - siloss_lambd * (jnp.sum(dl) / n) ** 2

    # GradientLoss_Li
    p4, t4, m4 = pred, target, valid_mask
    if p4.ndim == 3:
        p4, t4, m4 = p4[:, None], t4[:, None], m4[:, None]
    m4f = m4.astype(jnp.float32)
    target_trans = t4 + (1.0 - m4f) * 1000.0
    pred_log = jnp.log(p4)
    gt_log = jnp.log(target_trans)

    total = 0.0
    k = grad_step
    for scale in range(scale_num):
        st = 2 ** scale
        d = pred_log[:, ::st, ::st] - gt_log[:, ::st, ::st]
        mm = m4f[:, ::st, ::st]
        v_m = mm[:, :, :-k, :] * mm[:, :, k:, :]
        v_g = jnp.abs(d[:, :, :-k, :] - d[:, :, k:, :]) * v_m
        h_m = mm[:, :, :, :-k] * mm[:, :, :, k:]
        h_g = jnp.abs(d[:, :, :, :-k] - d[:, :, :, k:]) * h_m
        N = jnp.sum(h_m) + jnp.sum(v_m) + 1e-6
        total = total + (jnp.sum(h_g) + jnp.sum(v_g)) / N
    grad = total / scale_num
    return si + grad_loss_weight * grad, si, grad


def _run_case(loss_fn, B, C, H, W, seed, inval):
    k1, k2 = jax.random.split(jax.random.PRNGKey(seed))
    prediction = jax.random.uniform(k1, (B, C, H, W), jnp.float32,
                                    minval=0.1, maxval=10.0)
    target = jax.random.uniform(k2, (B, C, H, W), jnp.float32,
                                minval=0.1, maxval=10.0)
    valid_mask = jnp.ones((B, C, H, W), jnp.bool_)
    valid_mask = valid_mask.at[:, :, :inval[0], :inval[1]].set(False)

    total, si, grad = loss_fn(prediction, target, valid_mask)
    jax.block_until_ready(total)

    # Host-side equivalent of the module's nan/inf RuntimeError checks.
    assert (np.isfinite(float(total)) and np.isfinite(float(si))
            and np.isfinite(float(grad))), \
        f"MixedLoss error, {total}, si: {si}, grad: {grad}"

    rt, rs, rg = ref_mixed_loss(prediction, target, valid_mask)
    np.testing.assert_allclose(float(si), float(rs), rtol=1e-4, atol=1e-5)
    np.testing.assert_allclose(float(grad), float(rg), rtol=1e-4, atol=1e-5)
    np.testing.assert_allclose(float(total), float(rt), rtol=1e-4, atol=1e-5)


if __name__ == "__main__":
    loss_fn = jax.jit(mixed_loss)
    # Main case (matches the module's typical depth-map usage).
    _run_case(loss_fn, B=2, C=4, H=16, W=16, seed=0, inval=(3, 5))
    # Decimation-boundary case: C and H not divisible by 2**(scale_num-1).
    _run_case(loss_fn, B=2, C=3, H=20, W=16, seed=1, inval=(5, 7))
    print("KERNEL_OK")
</pallas_src>

<mosaic_0001>
module attributes {stable_mosaic.version = 11 : i64} {
  func.func @mixed_loss_kernel(%arg0: i32, %arg1: i32, %arg2: memref<1x1x16x16xf32, #tpu.memory_space<vmem>>, %arg3: memref<1x1x16x16xf32, #tpu.memory_space<vmem>>, %arg4: memref<1x1x16x16xi8, #tpu.memory_space<vmem>>, %arg5: memref<1x1x11xf32, #tpu.memory_space<smem>>) attributes {dimension_semantics = [#tpu.dimension_semantics<parallel>, #tpu.dimension_semantics<parallel>], iteration_bounds = array<i64: 2, 4>, scalar_prefetch = 0 : i64, scratch_operands = 0 : i64, tpu.core_type = #tpu.core_type<tc>, window_params = [{transform_indices = @transform_0, window_bounds = array<i64: 1, 1, 16, 16>}, {transform_indices = @transform_1, window_bounds = array<i64: 1, 1, 16, 16>}, {transform_indices = @transform_2, window_bounds = array<i64: 1, 1, 16, 16>}, {transform_indices = @transform_3, window_bounds = array<i64: 1, 1, 11>}]} {
    %c0 = arith.constant 0 : index
    %c0_0 = arith.constant 0 : index
    %c0_1 = arith.constant 0 : index
    %c0_2 = arith.constant 0 : index
    %0 = vector.load %arg2[%c0, %c0_0, %c0_1, %c0_2] : memref<1x1x16x16xf32, #tpu.memory_space<vmem>>, vector<1x1x16x16xf32>
    %1 = vector.shape_cast %0 : vector<1x1x16x16xf32> to vector<16x16xf32>
    %c0_3 = arith.constant 0 : index
    %c0_4 = arith.constant 0 : index
    %c0_5 = arith.constant 0 : index
    %c0_6 = arith.constant 0 : index
    %2 = vector.load %arg3[%c0_3, %c0_4, %c0_5, %c0_6] : memref<1x1x16x16xf32, #tpu.memory_space<vmem>>, vector<1x1x16x16xf32>
    %3 = vector.shape_cast %2 : vector<1x1x16x16xf32> to vector<16x16xf32>
    %c0_7 = arith.constant 0 : index
    %c0_8 = arith.constant 0 : index
    %c0_9 = arith.constant 0 : index
    %c0_10 = arith.constant 0 : index
    %4 = vector.load %arg4[%c0_7, %c0_8, %c0_9, %c0_10] : memref<1x1x16x16xi8, #tpu.memory_space<vmem>>, vector<1x1x16x16xi8>
    %5 = vector.shape_cast %4 : vector<1x1x16x16xi8> to vector<16x16xi8>
    %6 = arith.sitofp %5 : vector<16x16xi8> to vector<16x16xf32>
    %cst = arith.constant 9.99999993E-9 : f32
    %7 = vector.broadcast %cst : f32 to vector<16x16xf32>
    %8 = arith.addf %1, %7 : vector<16x16xf32>
    %9 = math.log %8 : vector<16x16xf32>
    %cst_11 = arith.constant 9.99999993E-9 : f32
    %10 = vector.broadcast %cst_11 : f32 to vector<16x16xf32>
    %11 = arith.addf %3, %10 : vector<16x16xf32>
    %cst_12 = arith.constant 1.000000e+00 : f32
    %12 = vector.broadcast %cst_12 : f32 to vector<16x16xf32>
    %13 = arith.subf %12, %6 : vector<16x16xf32>
    %cst_13 = arith.constant 1.000000e+03 : f32
    %14 = vector.broadcast %cst_13 : f32 to vector<16x16xf32>
    %15 = arith.mulf %13, %14 : vector<16x16xf32>
    %16 = arith.addf %11, %15 : vector<16x16xf32>
    %17 = math.log %16 : vector<16x16xf32>
    %18 = arith.subf %17, %9 : vector<16x16xf32>
    %19 = arith.mulf %18, %6 : vector<16x16xf32>
    %20 = vector.shape_cast %19 : vector<16x16xf32> to vector<1x16x16xf32>
    %cst_14 = arith.constant dense<0.000000e+00> : vector<1xf32>
    %21 = vector.multi_reduction <add>, %20, %cst_14 [1, 2] : vector<1x16x16xf32> to vector<1xf32>
    %22 = vector.shape_cast %21 : vector<1xf32> to vector<1x1x1xf32>
    %23 = vector.extract %22[0, 0, 0] : f32 from vector<1x1x1xf32>
    %c0_15 = arith.constant 0 : index
    %c0_16 = arith.constant 0 : index
    %c0_17 = arith.constant 0 : index
    %24 = memref.load %arg5[%c0_15, %c0_16, %c0_17] : memref<1x1x11xf32, #tpu.memory_space<smem>>
    memref.store %23, %arg5[%c0_15, %c0_16, %c0_17] : memref<1x1x11xf32, #tpu.memory_space<smem>>
    %25 = arith.mulf %19, %18 : vector<16x16xf32>
    %26 = vector.shape_cast %25 : vector<16x16xf32> to vector<1x16x16xf32>
    %cst_18 = arith.constant dense<0.000000e+00> : vector<1xf32>
    %27 = vector.multi_reduction <add>, %26, %cst_18 [1, 2] : vector<1x16x16xf32> to vector<1xf32>
    %28 = vector.shape_cast %27 : vector<1xf32> to vector<1x1x1xf32>
    %29 = vector.extract %28[0, 0, 0] : f32 from vector<1x1x1xf32>
    %c0_19 = arith.constant 0 : index
    %c0_20 = arith.constant 0 : index
    %c1 = arith.constant 1 : index
    %30 = memref.load %arg5[%c0_19, %c0_20, %c1] : memref<1x1x11xf32, #tpu.memory_space<smem>>
    memref.store %29, %arg5[%c0_19, %c0_20, %c1] : memref<1x1x11xf32, #tpu.memory_space<smem>>
    %31 = vector.shape_cast %6 : vector<16x16xf32> to vector<1x16x16xf32>
    %cst_21 = arith.constant dense<0.000000e+00> : vector<1xf32>
    %32 = vector.multi_reduction <add>, %31, %cst_21 [1, 2] : vector<1x16x16xf32> to vector<1xf32>
    %33 = vector.shape_cast %32 : vector<1xf32> to vector<1x1x1xf32>
    %34 = vector.extract %33[0, 0, 0] : f32 from vector<1x1x1xf32>
    %c0_22 = arith.constant 0 : index
    %c0_23 = arith.constant 0 : index
    %c2 = arith.constant 2 : index
    %35 = memref.load %arg5[%c0_22, %c0_23, %c2] : memref<1x1x11xf32, #tpu.memory_space<smem>>
    memref.store %34, %arg5[%c0_22, %c0_23, %c2] : memref<1x1x11xf32, #tpu.memory_space<smem>>
    %36 = vector.extract_strided_slice %6 {offsets = [0, 0], sizes = [16, 14], strides = [1, 1]} : vector<16x16xf32> to vector<16x14xf32>
    %37 = vector.extract_strided_slice %6 {offsets = [0, 2], sizes = [16, 14], strides = [1, 1]} : vector<16x16xf32> to vector<16x14xf32>
    %38 = arith.mulf %36, %37 : vector<16x14xf32>
    %39 = vector.extract_strided_slice %18 {offsets = [0, 0], sizes = [16, 14], strides = [1, 1]} : vector<16x16xf32> to vector<16x14xf32>
    %40 = vector.extract_strided_slice %18 {offsets = [0, 2], sizes = [16, 14], strides = [1, 1]} : vector<16x16xf32> to vector<16x14xf32>
    %41 = arith.subf %39, %40 : vector<16x14xf32>
    %42 = math.absf %41 : vector<16x14xf32>
    %43 = arith.mulf %42, %38 : vector<16x14xf32>
    %cst_24 = arith.constant dense<0.000000e+00> : vector<16xf32>
    %44 = vector.multi_reduction <add>, %43, %cst_24 [1] : vector<16x14xf32> to vector<16xf32>
    %45 = vector.shape_cast %44 : vector<16xf32> to vector<16x1xf32>
    %cst_25 = arith.constant dense<0.000000e+00> : vector<16xf32>
    %46 = vector.multi_reduction <add>, %38, %cst_25 [1] : vector<16x14xf32> to vector<16xf32>
    %47 = vector.shape_cast %46 : vector<16xf32> to vector<16x1xf32>
    %48 = tpu.iota {dimensions = array<i32: 0>} : vector<16x1xi32>
    %cst_26 = arith.constant 0.000000e+00 : f32
    %c0_27 = arith.constant 0 : index
    %c0_28 = arith.constant 0 : index
    %c3 = arith.constant 3 : index
    %49 = memref.load %arg5[%c0_27, %c0_28, %c3] : memref<1x1x11xf32, #tpu.memory_space<smem>>
    memref.store %cst_26, %arg5[%c0_27, %c0_28, %c3] : memref<1x1x11xf32, #tpu.memory_space<smem>>
    %cst_29 = arith.constant 0.000000e+00 : f32
    %c0_30 = arith.constant 0 : index
    %c0_31 = arith.constant 0 : index
    %c4 = arith.constant 4 : index
    %50 = memref.load %arg5[%c0_30, %c0_31, %c4] : memref<1x1x11xf32, #tpu.memory_space<smem>>
    memref.store %cst_29, %arg5[%c0_30, %c0_31, %c4] : memref<1x1x11xf32, #tpu.memory_space<smem>>
    %51 = vector.shape_cast %45 : vector<16x1xf32> to vector<1x16x1xf32>
    %cst_32 = arith.constant dense<0.000000e+00> : vector<1xf32>
    %52 = vector.multi_reduction <add>, %51, %cst_32 [1, 2] : vector<1x16x1xf32> to vector<1xf32>
    %53 = vector.shape_cast %52 : vector<1xf32> to vector<1x1x1xf32>
    %54 = vector.extract %53[0, 0, 0] : f32 from vector<1x1x1xf32>
    %55 = vector.shape_cast %47 : vector<16x1xf32> to vector<1x16x1xf32>
    %cst_33 = arith.constant dense<0.000000e+00> : vector<1xf32>
    %56 = vector.multi_reduction <add>, %55, %cst_33 [1, 2] : vector<1x16x1xf32> to vector<1xf32>
    %57 = vector.shape_cast %56 : vector<1xf32> to vector<1x1x1xf32>
    %58 = vector.extract %57[0, 0, 0] : f32 from vector<1x1x1xf32>
    %59 = vector.extract_strided_slice %6 {offsets = [0, 0], sizes = [14, 16], strides = [1, 1]} : vector<16x16xf32> to vector<14x16xf32>
    %60 = vector.extract_strided_slice %6 {offsets = [2, 0], sizes = [14, 16], strides = [1, 1]} : vector<16x16xf32> to vector<14x16xf32>
    %61 = arith.mulf %59, %60 : vector<14x16xf32>
    %62 = vector.extract_strided_slice %18 {offsets = [0, 0], sizes = [14, 16], strides = [1, 1]} : vector<16x16xf32> to vector<14x16xf32>
    %63 = vector.extract_strided_slice %18 {offsets = [2, 0], sizes = [14, 16], strides = [1, 1]} : vector<16x16xf32> to vector<14x16xf32>
    %64 = arith.subf %62, %63 : vector<14x16xf32>
    %65 = math.absf %64 : vector<14x16xf32>
    %66 = arith.mulf %65, %61 : vector<14x16xf32>
    %cst_34 = arith.constant dense<0.000000e+00> : vector<14xf32>
    %67 = vector.multi_reduction <add>, %66, %cst_34 [1] : vector<14x16xf32> to vector<14xf32>
    %68 = vector.shape_cast %67 : vector<14xf32> to vector<14x1xf32>
    %cst_35 = arith.constant dense<0.000000e+00> : vector<14xf32>
    %69 = vector.multi_reduction <add>, %61, %cst_35 [1] : vector<14x16xf32> to vector<14xf32>
    %70 = vector.shape_cast %69 : vector<14xf32> to vector<14x1xf32>
    %71 = vector.shape_cast %68 : vector<14x1xf32> to vector<1x14x1xf32>
    %cst_36 = arith.constant dense<0.000000e+00> : vector<1xf32>
    %72 = vector.multi_reduction <add>, %71, %cst_36 [1, 2] : vector<1x14x1xf32> to vector<1xf32>
    %73 = vector.shape_cast %72 : vector<1xf32> to vector<1x1x1xf32>
    %74 = vector.extract %73[0, 0, 0] : f32 from vector<1x1x1xf32>
    %75 = arith.addf %54, %74 : f32
    %76 = vector.shape_cast %70 : vector<14x1xf32> to vector<1x14x1xf32>
    %cst_37 = arith.constant dense<0.000000e+00> : vector<1xf32>
    %77 = vector.multi_reduction <add>, %76, %cst_37 [1, 2] : vector<1x14x1xf32> to vector<1xf32>
    %78 = vector.shape_cast %77 : vector<1xf32> to vector<1x1x1xf32>
    %79 = vector.extract %78[0, 0, 0] : f32 from vector<1x1x1xf32>
    %80 = arith.addf %58, %79 : f32
    %c0_38 = arith.constant 0 : index
    %c0_39 = arith.constant 0 : index
    %c3_40 = arith.constant 3 : index
    %81 = memref.load %arg5[%c0_38, %c0_39, %c3_40] : memref<1x1x11xf32, #tpu.memory_space<smem>>
    memref.store %75, %arg5[%c0_38, %c0_39, %c3_40] : memref<1x1x11xf32, #tpu.memory_space<smem>>
    %c0_41 = arith.constant 0 : index
    %c0_42 = arith.constant 0 : index
    %c4_43 = arith.constant 4 : index
    %82 = memref.load %arg5[%c0_41, %c0_42, %c4_43] : memref<1x1x11xf32, #tpu.memory_space<smem>>
    memref.store %80, %arg5[%c0_41, %c0_42, %c4_43] : memref<1x1x11xf32, #tpu.memory_space<smem>>
    %cst_44 = arith.constant 0.000000e+00 : f32
    %c0_45 = arith.constant 0 : index
    %c0_46 = arith.constant 0 : index
    %c5 = arith.constant 5 : index
    %83 = memref.load %arg5[%c0_45, %c0_46, %c5] : memref<1x1x11xf32, #tpu.memory_space<smem>>
    memref.store %cst_44, %arg5[%c0_45, %c0_46, %c5] : memref<1x1x11xf32, #tpu.memory_space<smem>>
    %cst_47 = arith.constant 0.000000e+00 : f32
    %c0_48 = arith.constant 0 : index
    %c0_49 = arith.constant 0 : index
    %c6 = arith.constant 6 : index
    %84 = memref.load %arg5[%c0_48, %c0_49, %c6] : memref<1x1x11xf32, #tpu.memory_space<smem>>
    memref.store %cst_47, %arg5[%c0_48, %c0_49, %c6] : memref<1x1x11xf32, #tpu.memory_space<smem>>
    %c1_i32 = arith.constant 1 : i32
    %85 = arith.andi %arg1, %c1_i32 : i32
    %c0_i32 = arith.constant 0 : i32
    %86 = arith.cmpi eq, %85, %c0_i32 : i32
    %87 = arith.extui %86 : i1 to i32
    %c0_i32_50 = arith.constant 0 : i32
    %88 = arith.cmpi ne, %87, %c0_i32_50 : i32
    scf.if %88 {
      %c1_i32_67 = arith.constant 1 : i32
      %101 = vector.broadcast %c1_i32_67 : i32 to vector<16x1xi32>
      %102 = arith.andi %48, %101 : vector<16x1xi32>
      %c0_i32_68 = arith.constant 0 : i32
      %103 = vector.broadcast %c0_i32_68 : i32 to vector<16x1xi32>
      %104 = arith.cmpi eq, %102, %103 : vector<16x1xi32>
      %105 = arith.extui %104 : vector<16x1xi1> to vector<16x1xi32>
      %106 = arith.sitofp %105 : vector<16x1xi32> to vector<16x1xf32>
      %107 = arith.mulf %106, %45 : vector<16x1xf32>
      %108 = vector.shape_cast %107 : vector<16x1xf32> to vector<1x16x1xf32>
      %cst_69 = arith.constant dense<0.000000e+00> : vector<1xf32>
      %109 = vector.multi_reduction <add>, %108, %cst_69 [1, 2] : vector<1x16x1xf32> to vector<1xf32>
      %110 = vector.shape_cast %109 : vector<1xf32> to vector<1x1x1xf32>
      %111 = vector.extract %110[0, 0, 0] : f32 from vector<1x1x1xf32>
      %112 = arith.mulf %106, %47 : vector<16x1xf32>
      %113 = vector.shape_cast %112 : vector<16x1xf32> to vector<1x16x1xf32>
      %cst_70 = arith.constant dense<0.000000e+00> : vector<1xf32>
      %114 = vector.multi_reduction <add>, %113, %cst_70 [1, 2] : vector<1x16x1xf32> to vector<1xf32>
      %115 = vector.shape_cast %114 : vector<1xf32> to vector<1x1x1xf32>
      %116 = vector.extract %115[0, 0, 0] : f32 from vector<1x1x1xf32>
      %117 = vector.extract_strided_slice %6 {offsets = [0, 0], sizes = [12, 16], strides = [1, 1]} : vector<16x16xf32> to vector<12x16xf32>
      %118 = vector.extract_strided_slice %6 {offsets = [4, 0], sizes = [12, 16], strides = [1, 1]} : vector<16x16xf32> to vector<12x16xf32>
      %119 = arith.mulf %117, %118 : vector<12x16xf32>
      %120 = vector.extract_strided_slice %18 {offsets = [0, 0], sizes = [12, 16], strides = [1, 1]} : vector<16x16xf32> to vector<12x16xf32>
      %121 = vector.extract_strided_slice %18 {offsets = [4, 0], sizes = [12, 16], strides = [1, 1]} : vector<16x16xf32> to vector<12x16xf32>
      %122 = arith.subf %120, %121 : vector<12x16xf32>
      %123 = math.absf %122 : vector<12x16xf32>
      %124 = arith.mulf %123, %119 : vector<12x16xf32>
      %cst_71 = arith.constant dense<0.000000e+00> : vector<12xf32>
      %125 = vector.multi_reduction <add>, %124, %cst_71 [1] : vector<12x16xf32> to vector<12xf32>
      %126 = vector.shape_cast %125 : vector<12xf32> to vector<12x1xf32>
      %cst_72 = arith.constant dense<0.000000e+00> : vector<12xf32>
      %127 = vector.multi_reduction <add>, %119, %cst_72 [1] : vector<12x16xf32> to vector<12xf32>
      %128 = vector.shape_cast %127 : vector<12xf32> to vector<12x1xf32>
      %129 = vector.extract_strided_slice %106 {offsets = [0, 0], sizes = [12, 1], strides = [1, 1]} : vector<16x1xf32> to vector<12x1xf32>
      %130 = arith.mulf %129, %126 : vector<12x1xf32>
      %131 = vector.extract_strided_slice %106 {offsets = [0, 0], sizes = [12, 1], strides = [1, 1]} : vector<16x1xf32> to vector<12x1xf32>
      %132 = arith.mulf %131, %128 : vector<12x1xf32>
      %133 = vector.shape_cast %130 : vector<12x1xf32> to vector<1x12x1xf32>
      %cst_73 = arith.constant dense<0.000000e+00> : vector<1xf32>
      %134 = vector.multi_reduction <add>, %133, %cst_73 [1, 2] : vector<1x12x1xf32> to vector<1xf32>
      %135 = vector.shape_cast %134 : vector<1xf32> to vector<1x1x1xf32>
      %136 = vector.extract %135[0, 0, 0] : f32 from vector<1x1x1xf32>
      %137 = arith.addf %111, %136 : f32
      %138 = vector.shape_cast %132 : vector<12x1xf32> to vector<1x12x1xf32>
      %cst_74 = arith.constant dense<0.000000e+00> : vector<1xf32>
      %139 = vector.multi_reduction <add>, %138, %cst_74 [1, 2] : vector<1x12x1xf32> to vector<1xf32>
      %140 = vector.shape_cast %139 : vector<1xf32> to vector<1x1x1xf32>
      %141 = vector.extract %140[0, 0, 0] : f32 from vector<1x1x1xf32>
      %142 = arith.addf %116, %141 : f32
      %c0_75 = arith.constant 0 : index
      %c0_76 = arith.constant 0 : index
      %c5_77 = arith.constant 5 : index
      %143 = memref.load %arg5[%c0_75, %c0_76, %c5_77] : memref<1x1x11xf32, #tpu.memory_space<smem>>
      memref.store %137, %arg5[%c0_75, %c0_76, %c5_77] : memref<1x1x11xf32, #tpu.memory_space<smem>>
      %c0_78 = arith.constant 0 : index
      %c0_79 = arith.constant 0 : index
      %c6_80 = arith.constant 6 : index
      %144 = memref.load %arg5[%c0_78, %c0_79, %c6_80] : memref<1x1x11xf32, #tpu.memory_space<smem>>
      memref.store %142, %arg5[%c0_78, %c0_79, %c6_80] : memref<1x1x11xf32, #tpu.memory_space<smem>>
    } else {
    }
    %cst_51 = arith.constant 0.000000e+00 : f32
    %c0_52 = arith.constant 0 : index
    %c0_53 = arith.constant 0 : index
    %c7 = arith.constant 7 : index
    %89 = memref.load %arg5[%c0_52, %c0_53, %c7] : memref<1x1x11xf32, #tpu.memory_space<smem>>
    memref.store %cst_51, %arg5[%c0_52, %c0_53, %c7] : memref<1x1x11xf32, #tpu.memory_space<smem>>
    %cst_54 = arith.constant 0.000000e+00 : f32
    %c0_55 = arith.constant 0 : index
    %c0_56 = arith.constant 0 : index
    %c8 = arith.constant 8 : index
    %90 = memref.load %arg5[%c0_55, %c0_56, %c8] : memref<1x1x11xf32, #tpu.memory_space<smem>>
    memref.store %cst_54, %arg5[%c0_55, %c0_56, %c8] : memref<1x1x11xf32, #tpu.memory_space<smem>>
    %c3_i32 = arith.constant 3 : i32
    %91 = arith.andi %arg1, %c3_i32 : i32
    %c0_i32_57 = arith.constant 0 : i32
    %92 = arith.cmpi eq, %91, %c0_i32_57 : i32
    %93 = arith.extui %92 : i1 to i32
    %c0_i32_58 = arith.constant 0 : i32
    %94 = arith.cmpi ne, %93, %c0_i32_58 : i32
    scf.if %94 {
      %c3_i32_67 = arith.constant 3 : i32
      %101 = vector.broadcast %c3_i32_67 : i32 to vector<16x1xi32>
      %102 = arith.andi %48, %101 : vector<16x1xi32>
      %c0_i32_68 = arith.constant 0 : i32
      %103 = vector.broadcast %c0_i32_68 : i32 to vector<16x1xi32>
      %104 = arith.cmpi eq, %102, %103 : vector<16x1xi32>
      %105 = arith.extui %104 : vector<16x1xi1> to vector<16x1xi32>
      %106 = arith.sitofp %105 : vector<16x1xi32> to vector<16x1xf32>
      %107 = arith.mulf %106, %45 : vector<16x1xf32>
      %108 = vector.shape_cast %107 : vector<16x1xf32> to vector<1x16x1xf32>
      %cst_69 = arith.constant dense<0.000000e+00> : vector<1xf32>
      %109 = vector.multi_reduction <add>, %108, %cst_69 [1, 2] : vector<1x16x1xf32> to vector<1xf32>
      %110 = vector.shape_cast %109 : vector<1xf32> to vector<1x1x1xf32>
      %111 = vector.extract %110[0, 0, 0] : f32 from vector<1x1x1xf32>
      %112 = arith.mulf %106, %47 : vector<16x1xf32>
      %113 = vector.shape_cast %112 : vector<16x1xf32> to vector<1x16x1xf32>
      %cst_70 = arith.constant dense<0.000000e+00> : vector<1xf32>
      %114 = vector.multi_reduction <add>, %113, %cst_70 [1, 2] : vector<1x16x1xf32> to vector<1xf32>
      %115 = vector.shape_cast %114 : vector<1xf32> to vector<1x1x1xf32>
      %116 = vector.extract %115[0, 0, 0] : f32 from vector<1x1x1xf32>
      %117 = vector.extract_strided_slice %6 {offsets = [0, 0], sizes = [8, 16], strides = [1, 1]} : vector<16x16xf32> to vector<8x16xf32>
      %118 = vector.extract_strided_slice %6 {offsets = [8, 0], sizes = [8, 16], strides = [1, 1]} : vector<16x16xf32> to vector<8x16xf32>
      %119 = arith.mulf %117, %118 : vector<8x16xf32>
      %120 = vector.extract_strided_slice %18 {offsets = [0, 0], sizes = [8, 16], strides = [1, 1]} : vector<16x16xf32> to vector<8x16xf32>
      %121 = vector.extract_strided_slice %18 {offsets = [8, 0], sizes = [8, 16], strides = [1, 1]} : vector<16x16xf32> to vector<8x16xf32>
      %122 = arith.subf %120, %121 : vector<8x16xf32>
      %123 = math.absf %122 : vector<8x16xf32>
      %124 = arith.mulf %123, %119 : vector<8x16xf32>
      %cst_71 = arith.constant dense<0.000000e+00> : vector<8xf32>
      %125 = vector.multi_reduction <add>, %124, %cst_71 [1] : vector<8x16xf32> to vector<8xf32>
      %126 = vector.shape_cast %125 : vector<8xf32> to vector<8x1xf32>
      %cst_72 = arith.constant dense<0.000000e+00> : vector<8xf32>
      %127 = vector.multi_reduction <add>, %119, %cst_72 [1] : vector<8x16xf32> to vector<8xf32>
      %128 = vector.shape_cast %127 : vector<8xf32> to vector<8x1xf32>
      %129 = vector.extract_strided_slice %106 {offsets = [0, 0], sizes = [8, 1], strides = [1, 1]} : vector<16x1xf32> to vector<8x1xf32>
      %130 = arith.mulf %129, %126 : vector<8x1xf32>
      %131 = vector.extract_strided_slice %106 {offsets = [0, 0], sizes = [8, 1], strides = [1, 1]} : vector<16x1xf32> to vector<8x1xf32>
      %132 = arith.mulf %131, %128 : vector<8x1xf32>
      %133 = vector.shape_cast %130 : vector<8x1xf32> to vector<1x8x1xf32>
      %cst_73 = arith.constant dense<0.000000e+00> : vector<1xf32>
      %134 = vector.multi_reduction <add>, %133, %cst_73 [1, 2] : vector<1x8x1xf32> to vector<1xf32>
      %135 = vector.shape_cast %134 : vector<1xf32> to vector<1x1x1xf32>
      %136 = vector.extract %135[0, 0, 0] : f32 from vector<1x1x1xf32>
      %137 = arith.addf %111, %136 : f32
      %138 = vector.shape_cast %132 : vector<8x1xf32> to vector<1x8x1xf32>
      %cst_74 = arith.constant dense<0.000000e+00> : vector<1xf32>
      %139 = vector.multi_reduction <add>, %138, %cst_74 [1, 2] : vector<1x8x1xf32> to vector<1xf32>
      %140 = vector.shape_cast %139 : vector<1xf32> to vector<1x1x1xf32>
      %141 = vector.extract %140[0, 0, 0] : f32 from vector<1x1x1xf32>
      %142 = arith.addf %116, %141 : f32
      %c0_75 = arith.constant 0 : index
      %c0_76 = arith.constant 0 : index
      %c7_77 = arith.constant 7 : index
      %143 = memref.load %arg5[%c0_75, %c0_76, %c7_77] : memref<1x1x11xf32, #tpu.memory_space<smem>>
      memref.store %137, %arg5[%c0_75, %c0_76, %c7_77] : memref<1x1x11xf32, #tpu.memory_space<smem>>
      %c0_78 = arith.constant 0 : index
      %c0_79 = arith.constant 0 : index
      %c8_80 = arith.constant 8 : index
      %144 = memref.load %arg5[%c0_78, %c0_79, %c8_80] : memref<1x1x11xf32, #tpu.memory_space<smem>>
      memref.store %142, %arg5[%c0_78, %c0_79, %c8_80] : memref<1x1x11xf32, #tpu.memory_space<smem>>
    } else {
    }
    %cst_59 = arith.constant 0.000000e+00 : f32
    %c0_60 = arith.constant 0 : index
    %c0_61 = arith.constant 0 : index
    %c9 = arith.constant 9 : index
    %95 = memref.load %arg5[%c0_60, %c0_61, %c9] : memref<1x1x11xf32, #tpu.memory_space<smem>>
    memref.store %cst_59, %arg5[%c0_60, %c0_61, %c9] : memref<1x1x11xf32, #tpu.memory_space<smem>>
    %cst_62 = arith.constant 0.000000e+00 : f32
    %c0_63 = arith.constant 0 : index
    %c0_64 = arith.constant 0 : index
    %c10 = arith.constant 10 : index
    %96 = memref.load %arg5[%c0_63, %c0_64, %c10] : memref<1x1x11xf32, #tpu.memory_space<smem>>
    memref.store %cst_62, %arg5[%c0_63, %c0_64, %c10] : memref<1x1x11xf32, #tpu.memory_space<smem>>
    %c7_i32 = arith.constant 7 : i32
    %97 = arith.andi %arg1, %c7_i32 : i32
    %c0_i32_65 = arith.constant 0 : i32
    %98 = arith.cmpi eq, %97, %c0_i32_65 : i32
    %99 = arith.extui %98 : i1 to i32
    %c0_i32_66 = arith.constant 0 : i32
    %100 = arith.cmpi ne, %99, %c0_i32_66 : i32
    scf.if %100 {
      %c7_i32_67 = arith.constant 7 : i32
      %101 = vector.broadcast %c7_i32_67 : i32 to vector<16x1xi32>
      %102 = arith.andi %48, %101 : vector<16x1xi32>
      %c0_i32_68 = arith.constant 0 : i32
      %103 = vector.broadcast %c0_i32_68 : i32 to vector<16x1xi32>
      %104 = arith.cmpi eq, %102, %103 : vector<16x1xi32>
      %105 = arith.extui %104 : vector<16x1xi1> to vector<16x1xi32>
      %106 = arith.sitofp %105 : vector<16x1xi32> to vector<16x1xf32>
      %107 = arith.mulf %106, %45 : vector<16x1xf32>
      %108 = vector.shape_cast %107 : vector<16x1xf32> to vector<1x16x1xf32>
      %cst_69 = arith.constant dense<0.000000e+00> : vector<1xf32>
      %109 = vector.multi_reduction <add>, %108, %cst_69 [1, 2] : vector<1x16x1xf32> to vector<1xf32>
      %110 = vector.shape_cast %109 : vector<1xf32> to vector<1x1x1xf32>
      %111 = vector.extract %110[0, 0, 0] : f32 from vector<1x1x1xf32>
      %112 = arith.mulf %106, %47 : vector<16x1xf32>
      %113 = vector.shape_cast %112 : vector<16x1xf32> to vector<1x16x1xf32>
      %cst_70 = arith.constant dense<0.000000e+00> : vector<1xf32>
      %114 = vector.multi_reduction <add>, %113, %cst_70 [1, 2] : vector<1x16x1xf32> to vector<1xf32>
      %115 = vector.shape_cast %114 : vector<1xf32> to vector<1x1x1xf32>
      %116 = vector.extract %115[0, 0, 0] : f32 from vector<1x1x1xf32>
      %c0_71 = arith.constant 0 : index
      %c0_72 = arith.constant 0 : index
      %c9_73 = arith.constant 9 : index
      %117 = memref.load %arg5[%c0_71, %c0_72, %c9_73] : memref<1x1x11xf32, #tpu.memory_space<smem>>
      memref.store %111, %arg5[%c0_71, %c0_72, %c9_73] : memref<1x1x11xf32, #tpu.memory_space<smem>>
      %c0_74 = arith.constant 0 : index
      %c0_75 = arith.constant 0 : index
      %c10_76 = arith.constant 10 : index
      %118 = memref.load %arg5[%c0_74, %c0_75, %c10_76] : memref<1x1x11xf32, #tpu.memory_space<smem>>
      memref.store %116, %arg5[%c0_74, %c0_75, %c10_76] : memref<1x1x11xf32, #tpu.memory_space<smem>>
    } else {
    }
    return
  }
  func.func @transform_0(%arg0: i32, %arg1: i32) -> (i32, i32, i32, i32) {
    %c0_i32 = arith.constant 0 : i32
    %c0_i32_0 = arith.constant 0 : i32
    %c0_i32_1 = arith.constant 0 : i32
    return %arg0, %arg1, %c0_i32, %c0_i32_0 : i32, i32, i32, i32
  }
  func.func @transform_1(%arg0: i32, %arg1: i32) -> (i32, i32, i32, i32) {
    %c0_i32 = arith.constant 0 : i32
    %c0_i32_0 = arith.constant 0 : i32
    %c0_i32_1 = arith.constant 0 : i32
    return %arg0, %arg1, %c0_i32, %c0_i32_0 : i32, i32, i32, i32
  }
  func.func @transform_2(%arg0: i32, %arg1: i32) -> (i32, i32, i32, i32) {
    %c0_i32 = arith.constant 0 : i32
    %c0_i32_0 = arith.constant 0 : i32
    %c0_i32_1 = arith.constant 0 : i32
    return %arg0, %arg1, %c0_i32, %c0_i32_0 : i32, i32, i32, i32
  }
  func.func @transform_3(%arg0: i32, %arg1: i32) -> (i32, i32, i32) {
    %c4_i32 = arith.constant 4 : i32
    %0 = arith.muli %arg0, %c4_i32 : i32
    %1 = arith.addi %0, %arg1 : i32
    %c0_i32 = arith.constant 0 : i32
    %c0_i32_0 = arith.constant 0 : i32
    %c0_i32_1 = arith.constant 0 : i32
    return %1, %c0_i32, %c0_i32_0 : i32, i32, i32
  }
}

</mosaic_0001>

<llo_original>
// kernel: mixed_loss.1
$region0: #{mixed_loss.1}
  #allocation0 [shape = 'u32[]', space=smem, size = 0x4, offset = 0x4, fixed_abs, tag = 'smem constant byte address 0x4 - core index']
  #allocation1 [shape = 'u32[72,128]{1,0:T(1,128)}', space=vmem, size = 0x9000, scoped, tag = 'internal scratch']
  %s0 = inlined_call_operand.hbm [shape: f32[2,4,16,16], index: 0, kind: input, shape index: {}]
  %s1 = inlined_call_operand.hbm [shape: f32[2,4,16,16], index: 1, kind: input, shape index: {}]
  %s2 = inlined_call_operand.vmem [shape: s8[2,4,16,16], index: 2, kind: input, shape index: {}]
  %s3 = inlined_call_operand.vmem [shape: f32[8,1,11], index: 3, kind: output, shape index: {}]
  %s4 = sld [smem:[#allocation0]]
  $region65: #{mixed_loss.1} parent=0
    _
  %s6 = ssub.s32 1, %s4
  %s7 = scalar_select 0, %s6, %s4
  $region1: #{mixed_loss.1} parent=0
    #allocation2 [shape = 'u8[16384]{0}', space=vmem, size = 0x4000, scoped, tag = 'input window, operand 0']
    #allocation3 [shape = 's32[2]{0}', space=sflag, size = 0x8, scoped, tag = 'scoped memory for mixed_loss.1']
    #allocation4 [shape = 's32[2]{0}', space=sflag, size = 0x8, scoped, tag = 'scoped memory for mixed_loss.1']
    #allocation5 [shape = 'u8[16384]{0}', space=vmem, size = 0x4000, scoped, tag = 'input window, operand 1']
    #allocation6 [shape = 's32[2]{0}', space=sflag, size = 0x8, scoped, tag = 'scoped memory for mixed_loss.1']
    #allocation7 [shape = 'u8[1024]{0}', space=smem, size = 0x400, scoped, tag = 'output window, operand 0']
    %8 = vsyncpa [#allocation3], 0
    %s9 = scalar_lea.sflag [#allocation3], 1
    %10 = vsyncpa %s9, 0
    %11 = vsyncpa [#allocation6], 0
    %s12 = scalar_lea.sflag [#allocation6], 1
    %13 = vsyncpa %s12, 0
    %14 = vsyncpa [#allocation4], 0
    %s15 = scalar_lea.sflag [#allocation4], 1
    %16 = vsyncpa %s15, 0
    loop: start=0, step=1, limit=10
    $region2: #{mixed_loss.1} parent=1 // loop_pre_header
      _
    $region3: #{mixed_loss.1} parent=1 // loop_header
      %s18 = sphi 0, %s22
      %p19 = scmp.ge.s32.totalorder %s18, 10
      %s25 = sphi 0, %s37
      %s26 = sphi 0, %s33
      %s27 = sphi 0, %s25
      %s28 = sphi 0, %s26
      %s29 = sphi 0, %s27
      %s30 = sphi 0, %s28
      %s42 = sphi 0, %s44
      %s45 = sphi 0, %s42
      %s46 = sphi 0, %s45
      %s62 = sphi 0, %s46
      %s70 = sphi 0, %s72
      %s73 = sphi 0, %s70
      %s74 = sphi 0, %s73
      %s90 = sphi 0, %s74
      %s98 = sphi 0, %s100
      %s101 = sphi 0, %s98
      %s102 = sphi 0, %s101
      %s118 = sphi 0, %s102
      %s128 = sphi 0, %s130
      %s131 = sphi 0, %s128
      %s132 = sphi 0, %s131
      %s148 = sphi 0, %s132
    $region4: #{mixed_loss.1} parent=1 // loop_header_branch
      %21 = sbr.rel (%p19) target = $region8
    $region5: #{mixed_loss.1} parent=1 // loop_body
      %s23 = ssub.s32 %s18, 1
      %s24 = ssub.s32 %s18, 2
      %s31 = sadd.s32 1, %s26
      %p32 = scmp.ge.s32.totalorder %s31, 4
      %s33 = scalar_select %p32, 0, %s31
      %s34 = sadd.s32 1, %s25
      %s35 = scalar_select %p32, %s34, %s25
      %p36 = scmp.ge.s32.totalorder %s35, 2
      %s37 = scalar_select %p36, 0, %s35
      %s38 = ssub.s32 %s25, %s37
      %s39 = ssub.s32 %s26, %s33
      %s40 = sor.u32 %s38, %s39
      %p41 = scmp.eq.s32.totalorder %s40, 0
      %s43 = sadd.s32 %s42, 1
      %s44 = scalar_select %p41, %s42, %s43
      %p47 = pneg %p41
      %p48 = scmp.eq.s32.totalorder %s18, 7
      %p49 = por %p47, %p48
      %p50 = scmp.ne.s32.totalorder %s42, %s45
      %p51 = scmp.eq.s32.totalorder %s18, 0
      %p52 = por %p50, %p51
      %p53 = scmp.ne.s32.totalorder %s42, %s45
      %p54 = scmp.eq.s32.totalorder %s23, 7
      %p55 = por %p53, %p54
      %p56 = scmp.ne.s32.totalorder %s45, %s46
      %p57 = scmp.eq.s32.totalorder %s23, 0
      %p58 = por %p56, %p57
      %p59 = scmp.ne.s32.totalorder %s45, %s46
      %p60 = scmp.eq.s32.totalorder %s24, 7
      %p61 = por %p59, %p60
      %p63 = scmp.ne.s32.totalorder %s46, %s62
      %p64 = scmp.eq.s32.totalorder %s24, 0
      %p65 = por %p63, %p64
      %s66 = ssub.s32 %s25, %s37
      %s67 = ssub.s32 %s26, %s33
      %s68 = sor.u32 %s66, %s67
      %p69 = scmp.eq.s32.totalorder %s68, 0
      %s71 = sadd.s32 %s70, 1
      %s72 = scalar_select %p69, %s70, %s71
      %p75 = pneg %p69
      %p76 = scmp.eq.s32.totalorder %s18, 7
      %p77 = por %p75, %p76
      %p78 = scmp.ne.s32.totalorder %s70, %s73
      %p79 = scmp.eq.s32.totalorder %s18, 0
      %p80 = por %p78, %p79
      %p81 = scmp.ne.s32.totalorder %s70, %s73
      %p82 = scmp.eq.s32.totalorder %s23, 7
      %p83 = por %p81, %p82
      %p84 = scmp.ne.s32.totalorder %s73, %s74
      %p85 = scmp.eq.s32.totalorder %s23, 0
      %p86 = por %p84, %p85
      %p87 = scmp.ne.s32.totalorder %s73, %s74
      %p88 = scmp.eq.s32.totalorder %s24, 7
      %p89 = por %p87, %p88
      %p91 = scmp.ne.s32.totalorder %s74, %s90
      %p92 = scmp.eq.s32.totalorder %s24, 0
      %p93 = por %p91, %p92
      %s94 = ssub.s32 %s25, %s37
      %s95 = ssub.s32 %s26, %s33
      %s96 = sor.u32 %s94, %s95
      %p97 = scmp.eq.s32.totalorder %s96, 0
      %s99 = sadd.s32 %s98, 1
      %s100 = scalar_select %p97, %s98, %s99
      %p103 = pneg %p97
      %p104 = scmp.eq.s32.totalorder %s18, 7
      %p105 = por %p103, %p104
      %p106 = scmp.ne.s32.totalorder %s98, %s101
      %p107 = scmp.eq.s32.totalorder %s18, 0
      %p108 = por %p106, %p107
      %p109 = scmp.ne.s32.totalorder %s98, %s101
      %p110 = scmp.eq.s32.totalorder %s23, 7
      %p111 = por %p109, %p110
      %p112 = scmp.ne.s32.totalorder %s101, %s102
      %p113 = scmp.eq.s32.totalorder %s23, 0
      %p114 = por %p112, %p113
      %p115 = scmp.ne.s32.totalorder %s101, %s102
      %p116 = scmp.eq.s32.totalorder %s24, 7
      %p117 = por %p115, %p116
      %p119 = scmp.ne.s32.totalorder %s102, %s118
      %p120 = scmp.eq.s32.totalorder %s24, 0
      %p121 = por %p119, %p120
      %s122 = smul.u32 %s25, 4
      %s123 = sadd.s32 %s122, %s26
      %s124 = smul.u32 %s37, 4
      %s125 = sadd.s32 %s124, %s33
      %s126 = ssub.s32 %s123, %s125
      %p127 = scmp.eq.s32.totalorder %s126, 0
      %s129 = sadd.s32 %s128, 1
      %s130 = scalar_select %p127, %s128, %s129
      %p133 = pneg %p127
      %p134 = scmp.eq.s32.totalorder %s18, 7
      %p135 = por %p133, %p134
      %p136 = scmp.ne.s32.totalorder %s128, %s131
      %p137 = scmp.eq.s32.totalorder %s18, 0
      %p138 = por %p136, %p137
      %p139 = scmp.ne.s32.totalorder %s128, %s131
      %p140 = scmp.eq.s32.totalorder %s23, 7
      %p141 = por %p139, %p140
      %p142 = scmp.ne.s32.totalorder %s131, %s132
      %p143 = scmp.eq.s32.totalorder %s23, 0
      %p144 = por %p142, %p143
      %p145 = scmp.ne.s32.totalorder %s131, %s132
      %p146 = scmp.eq.s32.totalorder %s24, 7
      %p147 = por %p145, %p146
      %p149 = scmp.ne.s32.totalorder %s132, %s148
      %p150 = scmp.eq.s32.totalorder %s24, 0
      %p151 = por %p149, %p150
      %p152 = scmp.le.s32.totalorder 1, %s18
      %p153 = scmp.lt.s32.totalorder %s18, 9
      %p154 = pnand %p152, %p153
      %p155 = pneg %p154
      // Predicated region
      $region9: #{mixed_loss.1} parent=5 // pred_check
        _
      $region10: #{mixed_loss.1} parent=5 // pred_check_branch
        %157 = sbr.rel (%p154) target = $region12
      $region11: #{mixed_loss.1} parent=5 // pred_region
        %s158 = ssub.s32 %s18, 1
      $region12: #{mixed_loss.1} parent=5 // pred_fallthru
        _
      %p159 = scmp.lt.s32.totalorder %s18, 8
      // Predicated region
      $region13: #{mixed_loss.1} parent=5 // pred_check
        %p160 = pneg %p159
      $region14: #{mixed_loss.1} parent=5 // pred_check_branch
        %162 = sbr.rel (%p160) target = $region16
      $region15: #{mixed_loss.1} parent=5 // pred_region
        // Predicated region
        $region17: #{mixed_loss.1} parent=15 // pred_check
          %p163 = pneg %p52
        $region18: #{mixed_loss.1} parent=15 // pred_check_branch
          %165 = sbr.rel (%p163) target = $region20
        $region19: #{mixed_loss.1} parent=15 // pred_region
          %s166 = sand.u32 %s42, 1
          %s167 = scalar_lea.sflag [#allocation3], %s166
          %s168 = sand.u32 %s42, 1
          %s169 = smul.addr %s168, 16
          %s170 = scalar_lea.vmem [#allocation2], %s169
          %172 = vsyncadd %s167, 0
          %s173 = smul.addr %s26, 2
          %s174 = smul.addr %s25, 8
          %s175 = sadd.s32 %s173, %s174
          %s176 = smul.addr %s175, 8
          %s177 = scalar_lea.hbm %s0, %s176
          %s178 = sshll.u32 %s177, 4
          %s179 = int_to_ptr.hbm [resolvable:$true] %s178
          %s180 = sshll.u32 %s170, 4
          %s181 = int_to_ptr.vmem [resolvable:$true] %s180
          %186 = dma.hbm_to_vmem [thread:$0]  %s179, 256, %s181, %s167, 128, 128, 8
        $region20: #{mixed_loss.1} parent=15 // pred_fallthru
          _
        // Predicated region
        $region21: #{mixed_loss.1} parent=15 // pred_check
          %p187 = pneg %p80
        $region22: #{mixed_loss.1} parent=15 // pred_check_branch
          %189 = sbr.rel (%p187) target = $region24
        $region23: #{mixed_loss.1} parent=15 // pred_region
          %s190 = sand.u32 %s70, 1
          %s191 = scalar_lea.sflag [#allocation6], %s190
          %s192 = sand.u32 %s70, 1
          %s193 = smul.addr %s192, 16
          %s194 = scalar_lea.vmem [#allocation5], %s193
          %196 = vsyncadd %s191, 0
          %s197 = smul.addr %s26, 2
          %s198 = smul.addr %s25, 8
          %s199 = sadd.s32 %s197, %s198
          %s200 = smul.addr %s199, 8
          %s201 = scalar_lea.hbm %s1, %s200
          %s202 = sshll.u32 %s201, 4
          %s203 = int_to_ptr.hbm [resolvable:$true] %s202
          %s204 = sshll.u32 %s194, 4
          %s205 = int_to_ptr.vmem [resolvable:$true] %s204
          %210 = dma.hbm_to_vmem [thread:$0]  %s203, 256, %s205, %s191, 128, 128, 8
        $region24: #{mixed_loss.1} parent=15 // pred_fallthru
          _
        // Predicated region
        $region25: #{mixed_loss.1} parent=15 // pred_check
          %p211 = pneg %p108
        $region26: #{mixed_loss.1} parent=15 // pred_check_branch
          %213 = sbr.rel (%p211) target = $region28
        $region27: #{mixed_loss.1} parent=15 // pred_region
          %p214 = scmp.lt.s32.totalorder %s25, 1
          %s215 = scalar_select %p214, %s25, 1
          %p216 = scmp.lt.s32.totalorder %s26, 3
          %s217 = scalar_select %p216, %s26, 3
          %s218 = smul.addr %s217, 2
          %s219 = smul.addr %s215, 8
          %s220 = sadd.s32 %s218, %s219
          %s221 = smul.addr %s220, 2
          %s222 = scalar_lea.vmem %s2, %s221
        $region28: #{mixed_loss.1} parent=15 // pred_fallthru
          _
      $region16: #{mixed_loss.1} parent=5 // pred_fallthru
        _
      %p223 = scmp.le.s32.totalorder 1, %s18
      %p224 = scmp.lt.s32.totalorder %s18, 9
      %p225 = pnand %p223, %p224
      %p226 = pneg %p225
      // Predicated region
      $region29: #{mixed_loss.1} parent=5 // pred_check
        _
      $region30: #{mixed_loss.1} parent=5 // pred_check_branch
        %228 = sbr.rel (%p225) target = $region32
      $region31: #{mixed_loss.1} parent=5 // pred_region
        %s229 = ssub.s32 %s18, 1
        %s230 = sand.u32 %s45, 1
        %s231 = scalar_lea.sflag [#allocation3], %s230
        %s232 = sand.u32 %s45, 1
        %s233 = smul.addr %s232, 16
        %s234 = scalar_lea.vmem [#allocation2], %s233
        // Predicated region
        $region33: #{mixed_loss.1} parent=31 // pred_check
          %p235 = pneg %p58
        $region34: #{mixed_loss.1} parent=31 // pred_check_branch
          %237 = sbr.rel (%p235) target = $region36
        $region35: #{mixed_loss.1} parent=31 // pred_region
          %239 = dma.done %s231, 256
        $region36: #{mixed_loss.1} parent=31 // pred_fallthru
          _
        %s240 = sand.u32 %s73, 1
        %s241 = scalar_lea.sflag [#allocation6], %s240
        %s242 = sand.u32 %s73, 1
        %s243 = smul.addr %s242, 16
        %s244 = scalar_lea.vmem [#allocation5], %s243
        // Predicated region
        $region37: #{mixed_loss.1} parent=31 // pred_check
          %p245 = pneg %p86
        $region38: #{mixed_loss.1} parent=31 // pred_check_branch
          %247 = sbr.rel (%p245) target = $region40
        $region39: #{mixed_loss.1} parent=31 // pred_region
          %249 = dma.done %s241, 256
        $region40: #{mixed_loss.1} parent=31 // pred_fallthru
          _
        %s250 = sand.u32 %s45, 1
        %s251 = scalar_lea.sflag [#allocation3], %s250
        %s252 = sand.u32 %s45, 1
        %s253 = smul.addr %s252, 16
        %s254 = scalar_lea.vmem [#allocation2], %s253
        %p255 = pneg %p58
        %p256 = pneg %p55
        %s257 = sand.u32 %s73, 1
        %s258 = scalar_lea.sflag [#allocation6], %s257
        %s259 = sand.u32 %s73, 1
        %s260 = smul.addr %s259, 16
        %s261 = scalar_lea.vmem [#allocation5], %s260
        %p262 = pneg %p86
        %p263 = pneg %p83
        %p264 = scmp.lt.s32.totalorder %s27, 1
        %s265 = scalar_select %p264, %s27, 1
        %p266 = scmp.lt.s32.totalorder %s28, 3
        %s267 = scalar_select %p266, %s28, 3
        %s268 = smul.addr %s267, 2
        %s269 = smul.addr %s265, 8
        %s270 = sadd.s32 %s268, %s269
        %s271 = smul.addr %s270, 2
        %s272 = scalar_lea.vmem %s2, %s271
        %p273 = pneg %p114
        %p274 = pneg %p111
        %p275 = pneg %p144
        %p276 = pneg %p141
        %s277 = sand.u32 %s131, 1
        %s278 = scalar_lea.sflag [#allocation4], %s277
        %s279 = sand.u32 %s131, 1
        %s280 = smul.addr %s279, 128
        %s281 = scalar_lea.smem [#allocation7], %s280
        %p282 = scmp.lt.s32.totalorder %s27, 1
        %s283 = scalar_select %p282, %s27, 1
        %p284 = scmp.lt.s32.totalorder %s28, 3
        %s285 = scalar_select %p284, %s28, 3
        %s286 = smul.addr %s285, 2
        %s287 = smul.addr %s283, 8
        %s288 = sadd.s32 %s286, %s287
        %s289 = smul.addr %s288, 2
        %s290 = scalar_lea.vmem %s2, %s289
        %s291 = smul.u32 %s27, 4
        %s292 = sadd.s32 %s291, %s28
        %v293 = vld [vmem:[%s234] sm:$0xff]
        %v294 = vld [vmem:[%s234 + $0x8] sm:$0xff]
        %v295 = vld [vmem:[%s244] sm:$0xff]
        %v296 = vld [vmem:[%s244 + $0x8] sm:$0xff]
        %v297 = vld [vmem:[%s290] sm:$0x3]
        %v298 = vld [vmem:[%s290 + $0x2] sm:$0x3]
        %v299 = vunpack.c.0.s8 %v297
        %v300 = vunpack.c.0.s8 %v298
        %v301 = vcvt.s32.f32 %v299
        %v302 = vcvt.s32.f32 %v300
        %v303 = vadd.f32 %v293, 1e-08
        %v304 = vadd.f32 %v294, 1e-08
        %v305 = vlog2.pop %v303
        %v306 = vmul.f32 %v305, 0.6931472
        %v307 = vlog2.pop %v304
        %v308 = vmul.f32 %v307, 0.6931472
        %v309 = vadd.f32 %v295, 1e-08
        %v310 = vadd.f32 %v296, 1e-08
        %v311 = vsub.f32 1.0, %v301
        %v312 = vsub.f32 1.0, %v302
        %v313 = vmul.f32 %v311, 1000.0
        %v314 = vmul.f32 %v312, 1000.0
        %v315 = vadd.f32 %v309, %v313
        %v316 = vadd.f32 %v310, %v314
        %v317 = vlog2.pop %v315
        %v318 = vmul.f32 %v317, 0.6931472
        %v319 = vlog2.pop %v316
        %v320 = vmul.f32 %v319, 0.6931472
        %v321 = vsub.f32 %v318, %v306
        %v322 = vsub.f32 %v320, %v308
        %v323 = vmul.f32 %v321, %v301
        %v324 = vmul.f32 %v322, %v302
        %vm325 = vcmask 130048
        %v326 = vsel %vm325, %v323, 0.0
        %v327 = vsel %vm325, %v324, 0.0
        %v328 = vadd.f32 %v326, %v327
        %329 = vadd.xlane.f32.xlu0 %v328
        %v330 = vpop.xlane.xlu0 %329
        %v331 = vrot.slane %v330, 4
        %v332 = vadd.f32 %v330, %v331
        %v333 = vrot.slane %v332, 2
        %v334 = vadd.f32 %v332, %v333
        %v335 = vrot.slane %v334, 1
        %v336 = vadd.f32 %v334, %v335
        %s337 = vtos %v336
        %s338 = scalar_lea.smem %s281, 0 [#allocation7]
        %339 = sst [smem:[%s338]] %s337
        %v340 = vmul.f32 %v323, %v321
        %v341 = vmul.f32 %v324, %v322
        %v342 = vsel %vm325, %v340, 0.0
        %v343 = vsel %vm325, %v341, 0.0
        %v344 = vadd.f32 %v342, %v343
        %345 = vadd.xlane.f32.xlu0 %v344
        %v346 = vpop.xlane.xlu0 %345
        %v347 = vrot.slane %v346, 4
        %v348 = vadd.f32 %v346, %v347
        %v349 = vrot.slane %v348, 2
        %v350 = vadd.f32 %v348, %v349
        %v351 = vrot.slane %v350, 1
        %v352 = vadd.f32 %v350, %v351
        %s353 = vtos %v352
        %s354 = scalar_lea.smem %s281, 1 [#allocation7]
        %355 = sst [smem:[%s354]] %s353
        %v356 = vsel %vm325, %v301, 0.0
        %v357 = vsel %vm325, %v302, 0.0
        %v358 = vadd.f32 %v356, %v357
        %359 = vadd.xlane.f32.xlu0 %v358
        %v360 = vpop.xlane.xlu0 %359
        %v361 = vrot.slane %v360, 4
        %v362 = vadd.f32 %v360, %v361
        %v363 = vrot.slane %v362, 2
        %v364 = vadd.f32 %v362, %v363
        %v365 = vrot.slane %v364, 1
        %v366 = vadd.f32 %v364, %v365
        %s367 = vtos %v366
        %s368 = scalar_lea.smem %s281, 2 [#allocation7]
        %369 = sst [smem:[%s368]] %s367
        %372 = vrot.lane.b32.xlu0 %v301, 126
        %v373 = vpop.permute.xlu0 %372
        %374 = vrot.lane.b32.xlu0 %v302, 126
        %v375 = vpop.permute.xlu0 %374
        %v378 = vmul.f32 %v301, %v373
        %v379 = vmul.f32 %v302, %v375
        %382 = vrot.lane.b32.xlu0 %v321, 126
        %v383 = vpop.permute.xlu0 %382
        %384 = vrot.lane.b32.xlu0 %v322, 126
        %v385 = vpop.permute.xlu0 %384
        %v388 = vsub.f32 %v321, %v383
        %v389 = vsub.f32 %v322, %v385
        %v390 = vand.u32 2147483647, %v388
        %v391 = vand.u32 2147483647, %v389
        %v392 = vmul.f32 %v390, %v378
        %v393 = vmul.f32 %v391, %v379
        %vm394 = vcmask 113664
        %v395 = vsel %vm394, %v392, 0.0
        %396 = vadd.xlane.f32.xlu0 %v395
        %v397 = vpop.xlane.xlu0 %396
        %v398 = vsel %vm394, %v393, 0.0
        %399 = vadd.xlane.f32.xlu0 %v398
        %v400 = vpop.xlane.xlu0 %399
        %v401 = vsel %vm394, %v378, 0.0
        %402 = vadd.xlane.f32.xlu0 %v401
        %v403 = vpop.xlane.xlu0 %402
        %v404 = vsel %vm394, %v379, 0.0
        %405 = vadd.xlane.f32.xlu0 %v404
        %v406 = vpop.xlane.xlu0 %405
        %v407 = vlaneseq
        %v408 = vshrl.u32 %v407, 7
        %v409 = vadd.s32 %v408, 8
        %s410 = scalar_lea.smem %s281, 3 [#allocation7]
        %411 = sst [smem:[%s410]] 0.0
        %s412 = scalar_lea.smem %s281, 4 [#allocation7]
        %413 = sst [smem:[%s412]] 0.0
        %vm414 = vcmask 7168
        %v415 = vsel %vm414, %v397, 0.0
        %v416 = vsel %vm414, %v400, 0.0
        %v417 = vadd.f32 %v415, %v416
        %418 = vadd.xlane.f32.xlu0 %v417
        %v419 = vpop.xlane.xlu0 %418
        %v420 = vrot.slane %v419, 4
        %v421 = vadd.f32 %v419, %v420
        %v422 = vrot.slane %v421, 2
        %v423 = vadd.f32 %v421, %v422
        %v424 = vrot.slane %v423, 1
        %v425 = vadd.f32 %v423, %v424
        %s426 = vtos %v425
        %v427 = vsel %vm414, %v403, 0.0
        %v428 = vsel %vm414, %v406, 0.0
        %v429 = vadd.f32 %v427, %v428
        %430 = vadd.xlane.f32.xlu0 %v429
        %v431 = vpop.xlane.xlu0 %430
        %v432 = vrot.slane %v431, 4
        %v433 = vadd.f32 %v431, %v432
        %v434 = vrot.slane %v433, 2
        %v435 = vadd.f32 %v433, %v434
        %v436 = vrot.slane %v435, 1
        %v437 = vadd.f32 %v435, %v436
        %s438 = vtos %v437
        %vm439 = vcmask 1045504
        %v440 = vrot.slane %v301, 2
        %v441 = vrot.slane %v302, 2
        %v442 = vsel %vm439, %v440, %v441
        %v445 = vmul.f32 %v301, %v442
        %v446 = vmul.f32 %v302, %v441
        %v447 = vrot.slane %v321, 2
        %v448 = vrot.slane %v322, 2
        %v449 = vsel %vm439, %v447, %v448
        %v452 = vsub.f32 %v321, %v449
        %v453 = vsub.f32 %v322, %v448
        %v454 = vand.u32 2147483647, %v452
        %v455 = vand.u32 2147483647, %v453
        %v456 = vmul.f32 %v454, %v445
        %v457 = vmul.f32 %v455, %v446
        %v458 = vsel %vm325, %v456, 0.0
        %459 = vadd.xlane.f32.xlu0 %v458
        %v460 = vpop.xlane.xlu0 %459
        %vm461 = vcmask 128000
        %v462 = vsel %vm461, %v457, 0.0
        %463 = vadd.xlane.f32.xlu0 %v462
        %v464 = vpop.xlane.xlu0 %463
        %v465 = vsel %vm325, %v445, 0.0
        %466 = vadd.xlane.f32.xlu0 %v465
        %v467 = vpop.xlane.xlu0 %466
        %v468 = vsel %vm461, %v446, 0.0
        %469 = vadd.xlane.f32.xlu0 %v468
        %v470 = vpop.xlane.xlu0 %469
        %v471 = vsel %vm414, %v460, 0.0
        %vm472 = vcmask 5120
        %v473 = vsel %vm472, %v464, 0.0
        %v474 = vadd.f32 %v471, %v473
        %475 = vadd.xlane.f32.xlu0 %v474
        %v476 = vpop.xlane.xlu0 %475
        %v477 = vrot.slane %v476, 4
        %v478 = vadd.f32 %v476, %v477
        %v479 = vrot.slane %v478, 2
        %v480 = vadd.f32 %v478, %v479
        %v481 = vrot.slane %v480, 1
        %v482 = vadd.f32 %v480, %v481
        %s483 = vtos %v482
        %s484 = sadd.f32 %s426, %s483
        %v485 = vsel %vm414, %v467, 0.0
        %v486 = vsel %vm472, %v470, 0.0
        %v487 = vadd.f32 %v485, %v486
        %488 = vadd.xlane.f32.xlu0 %v487
        %v489 = vpop.xlane.xlu0 %488
        %v490 = vrot.slane %v489, 4
        %v491 = vadd.f32 %v489, %v490
        %v492 = vrot.slane %v491, 2
        %v493 = vadd.f32 %v491, %v492
        %v494 = vrot.slane %v493, 1
        %v495 = vadd.f32 %v493, %v494
        %s496 = vtos %v495
        %s497 = sadd.f32 %s438, %s496
        %498 = sst [smem:[%s410]] %s484
        %499 = sst [smem:[%s412]] %s497
        %s500 = scalar_lea.smem %s281, 5 [#allocation7]
        %501 = sst [smem:[%s500]] 0.0
        %s502 = scalar_lea.smem %s281, 6 [#allocation7]
        %503 = sst [smem:[%s502]] 0.0
        %s504 = sand.u32 %s28, 1
        %p505 = scmp.eq.s32.totalorder %s504, 0
        // Predicated region
        $region41: #{mixed_loss.1} parent=31 // pred_check
          %p506 = pneg %p505
        $region42: #{mixed_loss.1} parent=31 // pred_check_branch
          %508 = sbr.rel (%p506) target = $region44
        $region43: #{mixed_loss.1} parent=31 // pred_region
          %v509 = vand.u32 %v408, 1
          %v510 = vand.u32 %v409, 1
          %vm511 = vcmp.eq.s32.totalorder %v509, 0
          %vm512 = vcmp.eq.s32.totalorder %v510, 0
          %v513 = vsel %vm511, 1, 0
          %v514 = vsel %vm512, 1, 0
          %v515 = vcvt.s32.f32 %v513
          %v516 = vcvt.s32.f32 %v514
          %v517 = vmul.f32 %v515, %v397
          %v518 = vmul.f32 %v516, %v400
          %v519 = vsel %vm414, %v517, 0.0
          %v520 = vsel %vm414, %v518, 0.0
          %v521 = vadd.f32 %v519, %v520
          %522 = vadd.xlane.f32.xlu0 %v521
          %v523 = vpop.xlane.xlu0 %522
          %v524 = vrot.slane %v523, 4
          %v525 = vadd.f32 %v523, %v524
          %v526 = vrot.slane %v525, 2
          %v527 = vadd.f32 %v525, %v526
          %v528 = vrot.slane %v527, 1
          %v529 = vadd.f32 %v527, %v528
          %s530 = vtos %v529
          %v531 = vmul.f32 %v515, %v403
          %v532 = vmul.f32 %v516, %v406
          %v533 = vsel %vm414, %v531, 0.0
          %v534 = vsel %vm414, %v532, 0.0
          %v535 = vadd.f32 %v533, %v534
          %536 = vadd.xlane.f32.xlu0 %v535
          %v537 = vpop.xlane.xlu0 %536
          %v538 = vrot.slane %v537, 4
          %v539 = vadd.f32 %v537, %v538
          %v540 = vrot.slane %v539, 2
          %v541 = vadd.f32 %v539, %v540
          %v542 = vrot.slane %v541, 1
          %v543 = vadd.f32 %v541, %v542
          %s544 = vtos %v543
          %vm545 = vcmask 1043456
          %v546 = vrot.slane %v301, 4
          %v547 = vrot.slane %v302, 4
          %v548 = vsel %vm545, %v546, %v547
          %v551 = vmul.f32 %v301, %v548
          %v552 = vmul.f32 %v302, %v547
          %v553 = vrot.slane %v321, 4
          %v554 = vrot.slane %v322, 4
          %v555 = vsel %vm545, %v553, %v554
          %v558 = vsub.f32 %v321, %v555
          %v559 = vsub.f32 %v322, %v554
          %v560 = vand.u32 2147483647, %v558
          %v561 = vand.u32 2147483647, %v559
          %v562 = vmul.f32 %v560, %v551
          %v563 = vmul.f32 %v561, %v552
          %v564 = vsel %vm325, %v562, 0.0
          %565 = vadd.xlane.f32.xlu0 %v564
          %v566 = vpop.xlane.xlu0 %565
          %vm567 = vcmask 125952
          %v568 = vsel %vm567, %v563, 0.0
          %569 = vadd.xlane.f32.xlu0 %v568
          %v570 = vpop.xlane.xlu0 %569
          %v571 = vsel %vm325, %v551, 0.0
          %572 = vadd.xlane.f32.xlu0 %v571
          %v573 = vpop.xlane.xlu0 %572
          %v574 = vsel %vm567, %v552, 0.0
          %575 = vadd.xlane.f32.xlu0 %v574
          %v576 = vpop.xlane.xlu0 %575
          %v577 = vmul.f32 %v515, %v566
          %v578 = vmul.f32 %v516, %v570
          %v579 = vmul.f32 %v515, %v573
          %v580 = vmul.f32 %v516, %v576
          %v581 = vsel %vm414, %v577, 0.0
          %vm582 = vcmask 3072
          %v583 = vsel %vm582, %v578, 0.0
          %v584 = vadd.f32 %v581, %v583
          %585 = vadd.xlane.f32.xlu0 %v584
          %v586 = vpop.xlane.xlu0 %585
          %v587 = vrot.slane %v586, 4
          %v588 = vadd.f32 %v586, %v587
          %v589 = vrot.slane %v588, 2
          %v590 = vadd.f32 %v588, %v589
          %v591 = vrot.slane %v590, 1
          %v592 = vadd.f32 %v590, %v591
          %s593 = vtos %v592
          %s594 = sadd.f32 %s530, %s593
          %v595 = vsel %vm414, %v579, 0.0
          %v596 = vsel %vm582, %v580, 0.0
          %v597 = vadd.f32 %v595, %v596
          %598 = vadd.xlane.f32.xlu0 %v597
          %v599 = vpop.xlane.xlu0 %598
          %v600 = vrot.slane %v599, 4
          %v601 = vadd.f32 %v599, %v600
          %v602 = vrot.slane %v601, 2
          %v603 = vadd.f32 %v601, %v602
          %v604 = vrot.slane %v603, 1
          %v605 = vadd.f32 %v603, %v604
          %s606 = vtos %v605
          %s607 = sadd.f32 %s544, %s606
          %608 = sst [smem:[%s500]] %s594
          %609 = sst [smem:[%s502]] %s607
        $region44: #{mixed_loss.1} parent=31 // pred_fallthru
          _
        %s610 = scalar_lea.smem %s281, 7 [#allocation7]
        %611 = sst [smem:[%s610]] 0.0
        %s612 = scalar_lea.smem %s281, 8 [#allocation7]
        %613 = sst [smem:[%s612]] 0.0
        %s614 = sand.u32 %s28, 3
        %p615 = scmp.eq.s32.totalorder %s614, 0
        // Predicated region
        $region45: #{mixed_loss.1} parent=31 // pred_check
          %p616 = pneg %p615
        $region46: #{mixed_loss.1} parent=31 // pred_check_branch
          %618 = sbr.rel (%p616) target = $region48
        $region47: #{mixed_loss.1} parent=31 // pred_region
          %v619 = vand.u32 %v408, 3
          %v620 = vand.u32 %v409, 3
          %vm621 = vcmp.eq.s32.totalorder %v619, 0
          %vm622 = vcmp.eq.s32.totalorder %v620, 0
          %v623 = vsel %vm621, 1, 0
          %v624 = vsel %vm622, 1, 0
          %v625 = vcvt.s32.f32 %v623
          %v626 = vcvt.s32.f32 %v624
          %v627 = vmul.f32 %v625, %v397
          %v628 = vmul.f32 %v626, %v400
          %v629 = vsel %vm414, %v627, 0.0
          %v630 = vsel %vm414, %v628, 0.0
          %v631 = vadd.f32 %v629, %v630
          %632 = vadd.xlane.f32.xlu0 %v631
          %v633 = vpop.xlane.xlu0 %632
          %v634 = vrot.slane %v633, 4
          %v635 = vadd.f32 %v633, %v634
          %v636 = vrot.slane %v635, 2
          %v637 = vadd.f32 %v635, %v636
          %v638 = vrot.slane %v637, 1
          %v639 = vadd.f32 %v637, %v638
          %s640 = vtos %v639
          %v641 = vmul.f32 %v625, %v403
          %v642 = vmul.f32 %v626, %v406
          %v643 = vsel %vm414, %v641, 0.0
          %v644 = vsel %vm414, %v642, 0.0
          %v645 = vadd.f32 %v643, %v644
          %646 = vadd.xlane.f32.xlu0 %v645
          %v647 = vpop.xlane.xlu0 %646
          %v648 = vrot.slane %v647, 4
          %v649 = vadd.f32 %v647, %v648
          %v650 = vrot.slane %v649, 2
          %v651 = vadd.f32 %v649, %v650
          %v652 = vrot.slane %v651, 1
          %v653 = vadd.f32 %v651, %v652
          %s654 = vtos %v653
          %v655 = vmul.f32 %v301, %v302
          %v656 = vsub.f32 %v321, %v322
          %v657 = vand.u32 2147483647, %v656
          %v658 = vmul.f32 %v657, %v655
          %v659 = vsel %vm325, %v658, 0.0
          %660 = vadd.xlane.f32.xlu0 %v659
          %v661 = vpop.xlane.xlu0 %660
          %v662 = vsel %vm325, %v655, 0.0
          %663 = vadd.xlane.f32.xlu0 %v662
          %v664 = vpop.xlane.xlu0 %663
          %v665 = vmul.f32 %v625, %v661
          %v666 = vmul.f32 %v625, %v664
          %v667 = vsel %vm414, %v665, 0.0
          %668 = vadd.xlane.f32.xlu0 %v667
          %v669 = vpop.xlane.xlu0 %668
          %v670 = vrot.slane %v669, 4
          %v671 = vadd.f32 %v669, %v670
          %v672 = vrot.slane %v671, 2
          %v673 = vadd.f32 %v671, %v672
          %v674 = vrot.slane %v673, 1
          %v675 = vadd.f32 %v673, %v674
          %s676 = vtos %v675
          %s677 = sadd.f32 %s640, %s676
          %v678 = vsel %vm414, %v666, 0.0
          %679 = vadd.xlane.f32.xlu0 %v678
          %v680 = vpop.xlane.xlu0 %679
          %v681 = vrot.slane %v680, 4
          %v682 = vadd.f32 %v680, %v681
          %v683 = vrot.slane %v682, 2
          %v684 = vadd.f32 %v682, %v683
          %v685 = vrot.slane %v684, 1
          %v686 = vadd.f32 %v684, %v685
          %s687 = vtos %v686
          %s688 = sadd.f32 %s654, %s687
          %689 = sst [smem:[%s610]] %s677
          %690 = sst [smem:[%s612]] %s688
        $region48: #{mixed_loss.1} parent=31 // pred_fallthru
          _
        %s691 = scalar_lea.smem %s281, 9 [#allocation7]
        %692 = sst [smem:[%s691]] 0.0
        %s693 = scalar_lea.smem %s281, 10 [#allocation7]
        %694 = sst [smem:[%s693]] 0.0
        %s695 = sand.u32 %s28, 7
        %p696 = scmp.eq.s32.totalorder %s695, 0
        // Predicated region
        $region49: #{mixed_loss.1} parent=31 // pred_check
          %p697 = pneg %p696
        $region50: #{mixed_loss.1} parent=31 // pred_check_branch
          %699 = sbr.rel (%p697) target = $region52
        $region51: #{mixed_loss.1} parent=31 // pred_region
          %v700 = vand.u32 %v408, 7
          %v701 = vand.u32 %v409, 7
          %vm702 = vcmp.eq.s32.totalorder %v700, 0
          %vm703 = vcmp.eq.s32.totalorder %v701, 0
          %v704 = vsel %vm702, 1, 0
          %v705 = vsel %vm703, 1, 0
          %v706 = vcvt.s32.f32 %v704
          %v707 = vcvt.s32.f32 %v705
          %v708 = vmul.f32 %v706, %v397
          %v709 = vmul.f32 %v707, %v400
          %v710 = vsel %vm414, %v708, 0.0
          %v711 = vsel %vm414, %v709, 0.0
          %v712 = vadd.f32 %v710, %v711
          %713 = vadd.xlane.f32.xlu0 %v712
          %v714 = vpop.xlane.xlu0 %713
          %v715 = vrot.slane %v714, 4
          %v716 = vadd.f32 %v714, %v715
          %v717 = vrot.slane %v716, 2
          %v718 = vadd.f32 %v716, %v717
          %v719 = vrot.slane %v718, 1
          %v720 = vadd.f32 %v718, %v719
          %s721 = vtos %v720
          %v722 = vmul.f32 %v706, %v403
          %v723 = vmul.f32 %v707, %v406
          %v724 = vsel %vm414, %v722, 0.0
          %v725 = vsel %vm414, %v723, 0.0
          %v726 = vadd.f32 %v724, %v725
          %727 = vadd.xlane.f32.xlu0 %v726
          %v728 = vpop.xlane.xlu0 %727
          %v729 = vrot.slane %v728, 4
          %v730 = vadd.f32 %v728, %v729
          %v731 = vrot.slane %v730, 2
          %v732 = vadd.f32 %v730, %v731
          %v733 = vrot.slane %v732, 1
          %v734 = vadd.f32 %v732, %v733
          %s735 = vtos %v734
          %736 = sst [smem:[%s691]] %s721
          %737 = sst [smem:[%s693]] %s735
        $region52: #{mixed_loss.1} parent=31 // pred_fallthru
          _
        %s738 = sand.u32 %s131, 1
        %s739 = scalar_lea.sflag [#allocation4], %s738
        %s740 = sand.u32 %s131, 1
        %s741 = smul.addr %s740, 128
        %s742 = scalar_lea.smem [#allocation7], %s741
        // Predicated region
        $region53: #{mixed_loss.1} parent=31 // pred_check
          %p743 = pneg %p141
        $region54: #{mixed_loss.1} parent=31 // pred_check_branch
          %745 = sbr.rel (%p743) target = $region56
        $region55: #{mixed_loss.1} parent=31 // pred_region
          %s746 = smul.u32 %s27, 4
          %s747 = sadd.s32 %s746, %s28
          %749 = vsyncadd %s739, 0
          %s750 = scalar_lea.vmem %s3, %s747
          %s752 = sshll.u32 %s750, 4
          %s753 = int_to_ptr.vmem [resolvable:$true] %s752
          %755 = dma.smem_to_vmem %s742, 16, %s753, %s739
        $region56: #{mixed_loss.1} parent=31 // pred_fallthru
          _
      $region32: #{mixed_loss.1} parent=5 // pred_fallthru
        _
      %p756 = scmp.le.s32.totalorder 2, %s18
      // Predicated region
      $region57: #{mixed_loss.1} parent=5 // pred_check
        %p757 = pneg %p756
      $region58: #{mixed_loss.1} parent=5 // pred_check_branch
        %759 = sbr.rel (%p757) target = $region60
      $region59: #{mixed_loss.1} parent=5 // pred_region
        %s760 = ssub.s32 %s18, 2
        // Predicated region
        $region61: #{mixed_loss.1} parent=59 // pred_check
          %p761 = pneg %p147
        $region62: #{mixed_loss.1} parent=59 // pred_check_branch
          %763 = sbr.rel (%p761) target = $region64
        $region63: #{mixed_loss.1} parent=59 // pred_region
          %s764 = sand.u32 %s132, 1
          %s765 = scalar_lea.sflag [#allocation4], %s764
          %s766 = sand.u32 %s132, 1
          %s767 = smul.addr %s766, 128
          %s768 = scalar_lea.smem [#allocation7], %s767
          %770 = dma.done %s765, 16
        $region64: #{mixed_loss.1} parent=59 // pred_fallthru
          _
        %771 = sfence
      $region60: #{mixed_loss.1} parent=5 // pred_fallthru
        _
    $region6: #{mixed_loss.1} parent=1 // loop_footer
      %s22 = sadd.s32 1, %s18
    $region7: #{mixed_loss.1} parent=1 // loop_footer_branch
      %17 = sbr.rel target = $region3
    $region8: #{mixed_loss.1} parent=1 // loop_exit
      _
    %772 = vsyncpa [#allocation3], 1
    %s773 = scalar_lea.sflag [#allocation3], 1
    %774 = vsyncpa %s773, 1
    %775 = vsyncpa [#allocation6], 1
    %s776 = scalar_lea.sflag [#allocation6], 1
    %777 = vsyncpa %s776, 1
    %778 = vsyncpa [#allocation4], 1
    %s779 = scalar_lea.sflag [#allocation4], 1
    %780 = vsyncpa %s779, 1

</llo_original>
